<compile_context>
chip_gen: v6e
topology: v6e:2x2x1
jax: 0.10.0
libtpu: 0.0.40
codegen_flags: <defaults>
</compile_context>

<pallas_src>
import jax
import jax.numpy as jnp
from jax.experimental import pallas as pl
from jax.experimental.pallas import tpu as pltpu


# ------------------------------ kernel body -------------------------------

def _adapter_kernel(x2_ref, wa_ref, wg_ref, ba_ref, bg_ref, o_ref):
    """Fused Conv1d(k=2, s=2) + bias + SwiGLU on one (TM, TN) output tile.

    x2_ref: (TM, 2d)  rows = flattened (batch, out position), cols = [x_even, x_odd]
    wa_ref: (2d, TN)  stacked conv taps, columns for the 'a' half
    wg_ref: (2d, TN)  stacked conv taps, columns for the 'gate' half
    ba_ref: (1, TN)   f32 bias for the 'a' columns
    bg_ref: (1, TN)   f32 bias for the 'gate' columns
    o_ref : (TM, TN)
    """
    # In-kernel activation cast: x2 arrives in its original dtype, the cast to
    # the MXU compute dtype is a free VPU op hidden under MXU time.
    x2 = x2_ref[...].astype(wa_ref.dtype)
    # gate first, then 'a': only one f32 (TM, TN) matmul result live at a time.
    g = jnp.dot(x2, wg_ref[...], preferred_element_type=jnp.float32) + bg_ref[...]
    t = g * jax.lax.logistic(g)                  # silu(gate) in f32 (v5e-safe)
    a = jnp.dot(x2, wa_ref[...], preferred_element_type=jnp.float32) + ba_ref[...]
    o_ref[...] = (a * t).astype(o_ref.dtype)


# --------------------------- weight preparation ---------------------------

def prepare_adapter_weights(conv_weight, conv_bias, compute_dtype=None):
    """One-time weight packing (hoist out of the per-call forward path).

    conv_weight: (d_out, d_in, 2) PyTorch Conv1d layout; conv_bias: (d,).
    Returns (wa, wg, ba, bg) with wa/wg: (2d, d/2), ba/bg: (1, d/2) f32.
    """
    d = conv_weight.shape[0]
    assert conv_weight.shape == (d, d, 2)
    assert d % 2 == 0, "SwiGLU chunk requires even feature dim"
    w0 = jnp.transpose(conv_weight[:, :, 0])          # (in, out) even tap
    w1 = jnp.transpose(conv_weight[:, :, 1])          # (in, out) odd tap
    w = jnp.concatenate([w0, w1], axis=0)              # (2d, d)
    if compute_dtype is not None:
        w = w.astype(compute_dtype)
    half = d // 2
    wa, wg = w[:, :half], w[:, half:]
    ba = conv_bias[:half].reshape(1, half).astype(jnp.float32)
    bg = conv_bias[half:].reshape(1, half).astype(jnp.float32)
    return wa, wg, ba, bg


# ------------------------------ tile pickers -------------------------------

def _pick_tm(M, tm_cap, pack, prefer_even_grid=False):
    """Largest divisor of M that is a multiple of `pack` and <= tm_cap."""
    if M <= tm_cap:
        return M
    cands = [t for t in range(pack, tm_cap + 1, pack) if M % t == 0]
    if not cands:
        return None
    best = max(cands)
    if prefer_even_grid and (M // best) % 2 != 0:
        even = [t for t in cands if (M // t) % 2 == 0 and 2 * t >= best]
        if even:
            return max(even)
    return best


# -------------------------------- wrapper ----------------------------------

def cog_vlm_two_adapter(x, packed_weights, *, tm_max=512, tn_max=512):
    """x: (b, s, d); packed_weights from prepare_adapter_weights()."""
    wa, wg, ba, bg = packed_weights
    b, s, d = x.shape
    assert s % 2 == 0, "stride-2 conv requires even sequence length"
    half = wa.shape[1]
    assert wa.shape == (2 * d, half) and wg.shape == (2 * d, half)
    s2 = s // 2
    M = b * s2

    # Free, contiguous reshape: row m = [x[b, 2t, :], x[b, 2t+1, :]].
    # No dtype cast here -- the cast happens inside the kernel.
    x2 = x.reshape(M, 2 * d)

    out_dtype = x.dtype
    in_isz = jnp.dtype(x2.dtype).itemsize
    w_isz = jnp.dtype(wa.dtype).itemsize
    out_isz = jnp.dtype(out_dtype).itemsize
    pack = max(8, 32 // out_isz)            # sublane packing of the output dtype

    # ---- generation-aware VMEM budget ------------------------------------
    try:
        info = pltpu.get_tpu_info()
        vmem_cap = int(getattr(info, "vmem_capacity_bytes", 0)) or (64 << 20)
    except Exception:
        vmem_cap = 64 << 20                  # assume v7x-sized VMEM if unknown
    vmem_budget = (vmem_cap * 3) // 4        # headroom for compiler scratch

    def footprint(tm_, tn_):
        # Conservative: assumes double-buffered weights (Buffered(1) below
        # only reduces this when honoured by the compiler).
        return (2 * tm_ * 2 * d * in_isz           # activation tile, 2 bufs
                + 2 * 2 * (2 * d) * tn_ * w_isz    # wa + wg tiles, 2 bufs
                + 2 * 2 * tn_ * 4                  # biases
                + 2 * tm_ * tn_ * out_isz          # output tile, 2 bufs
                + 2 * tm_ * tn_ * 4)               # f32 matmul result + silu temp

    # ---- row tile: divisor of M (no host-side pad / output slice) --------
    row_pad = 0
    tm = _pick_tm(M, min(tm_max, M), pack)
    if tm is None:
        # TODO(synk): rare fallback -- M has no pack-aligned divisor <= tm_max.
        tm = max(pack, (min(tm_max, pl.cdiv(M, pack) * pack) // pack) * pack)
        row_pad = pl.cdiv(M, tm) * tm - M
        x2 = jnp.pad(x2, ((0, row_pad), (0, 0)))
    M_pad = M + row_pad

    # ---- column tile ------------------------------------------------------
    col_pad = 0
    if footprint(tm, half) <= vmem_budget:
        tn = half                            # grid_n == 1: x2 streamed exactly once
    else:
        tn = None
        t = (min(tn_max, half) // 128) * 128
        while t >= 128:
            if half % t == 0 and footprint(tm, t) <= vmem_budget:
                tn = t
                break
            t -= 128
        if tn is None:
            # Fail-safe: cap tn at a 128-aligned tile and pad the columns.
            tn = max(128, (tn_max // 128) * 128)
            col_pad = pl.cdiv(half, tn) * tn - half
            if col_pad:
                wa = jnp.pad(wa, ((0, 0), (0, col_pad)))
                wg = jnp.pad(wg, ((0, 0), (0, col_pad)))
                ba = jnp.pad(ba, ((0, 0), (0, col_pad)))
                bg = jnp.pad(bg, ((0, 0), (0, col_pad)))
    half_pad = half + col_pad
    grid_n = half_pad // tn
    grid_m = M_pad // tm

    # v7x megacore: prefer an even extent on the sharded grid axis.
    if grid_n % 2 == 1 and grid_m % 2 == 1 and grid_m > 1 and row_pad == 0:
        tm2 = _pick_tm(M, min(tm_max, M), pack, prefer_even_grid=True)
        if tm2 is not None:
            tm = tm2
            grid_m = M // tm

    vmem_bytes = int(min(max(2 * footprint(tm, tn), 16 << 20), vmem_budget))

    cost = pl.CostEstimate(
        flops=2 * M * (2 * d) * d + 4 * M * half,
        transcendentals=M * half,
        bytes_accessed=(M * 2 * d * in_isz
                        + 2 * (2 * d) * half * w_isz
                        + 2 * half * 4
                        + M * half * out_isz),
    )

    # Grid: column tiles OUTER, row tiles INNER -> weight tiles stay resident
    # across the M sweep; both axes are independent ("parallel").
    def build(weight_pipeline_mode):
        wkw = ({"pipeline_mode": weight_pipeline_mode}
               if weight_pipeline_mode is not None else {})
        return pl.pallas_call(
            _adapter_kernel,
            out_shape=jax.ShapeDtypeStruct((M_pad, half_pad), out_dtype),
            grid=(grid_n, grid_m),
            in_specs=[
                pl.BlockSpec((tm, 2 * d), lambda j, i: (i, 0)),
                pl.BlockSpec((2 * d, tn), lambda j, i: (0, j), **wkw),
                pl.BlockSpec((2 * d, tn), lambda j, i: (0, j), **wkw),
                pl.BlockSpec((1, tn), lambda j, i: (0, j), **wkw),
                pl.BlockSpec((1, tn), lambda j, i: (0, j), **wkw),
            ],
            out_specs=pl.BlockSpec((tm, tn), lambda j, i: (i, j)),
            compiler_params=pltpu.CompilerParams(
                dimension_semantics=("parallel", "parallel"),
                vmem_limit_bytes=vmem_bytes,
            ),
            cost_estimate=cost,
        )

    # Weights/biases never change along the inner M axis -> single-buffer them
    # (halves weight VMEM on v7x). Fall back to default double buffering if
    # this Pallas version rejects Buffered(1).
    buffered = getattr(pl, "Buffered", None)
    out = None
    if buffered is not None:
        try:
            out = build(buffered(1))(x2, wa, wg, ba, bg)
        except Exception:
            out = None
    if out is None:
        out = build(None)(x2, wa, wg, ba, bg)

    if row_pad:
        out = out[:M]
    if col_pad:
        out = out[:, :half]
    return out.reshape(b, s2, half)


# ------------------------- references (pure JAX) -------------------------

def _reference(x, conv_weight, conv_bias):
    """Pure-JAX reference matching PyTorch Conv1d(k=2,s=2) + zeta SwiGLU."""
    b, s, d = x.shape
    xp = x.reshape(b, s // 2, 2, d)
    y = jnp.einsum("btki,oik->bto", xp, conv_weight) + conv_bias
    a, gate = jnp.split(y, 2, axis=-1)
    return a * jax.nn.silu(gate)


def _reference_cast(x, conv_weight, conv_bias, dtype):
    """Reference with matmul inputs cast to `dtype` (matches bf16 MXU path)."""
    b, s, d = x.shape
    xp = x.reshape(b, s // 2, 2, d).astype(dtype)
    w = conv_weight.astype(dtype)
    y = jnp.einsum("btki,oik->bto", xp, w,
                   preferred_element_type=jnp.float32) + conv_bias
    a, gate = jnp.split(y, 2, axis=-1)
    return a * jax.nn.silu(gate)


if __name__ == "__main__":
    key = jax.random.PRNGKey(0)

    def make_inputs(key, b, s, d):
        kx, kw, kb = jax.random.split(key, 3)
        x = jax.random.normal(kx, (b, s, d), dtype=jnp.float32)
        bound = 1.0 / ((d * 2) ** 0.5)   # PyTorch Conv1d default init bound
        w = jax.random.uniform(kw, (d, d, 2), minval=-bound, maxval=bound,
                               dtype=jnp.float32)
        bias = jax.random.uniform(kb, (d,), minval=-bound, maxval=bound,
                                  dtype=jnp.float32)
        return x, w, bias

    # --- test 1: small shape (b=2, s=8, d=32), f32 compute, single tile ----
    k1, key = jax.random.split(key)
    b, s, d = 2, 8, 32
    x, w, bias = make_inputs(k1, b, s, d)
    packed = prepare_adapter_weights(w, bias)             # hoisted weight prep
    out = jax.block_until_ready(cog_vlm_two_adapter(x, packed))
    ref = _reference(x, w, bias)
    assert out.shape == (b, s // 2, d // 2), out.shape
    assert jnp.allclose(out, ref, atol=1e-5, rtol=1e-5), "f32 mismatch vs reference"

    # --- test 2: real M-grid + bf16 MXU path (in-kernel activation cast) ---
    k2, key = jax.random.split(key)
    b, s, d = 4, 256, 256
    x, w, bias = make_inputs(k2, b, s, d)
    packed = prepare_adapter_weights(w, bias, compute_dtype=jnp.bfloat16)
    out = jax.block_until_ready(cog_vlm_two_adapter(x, packed, tm_max=128))
    ref = _reference_cast(x, w, bias, jnp.bfloat16).astype(out.dtype)
    assert out.shape == (b, s // 2, d // 2), out.shape
    assert jnp.allclose(out, ref, atol=2e-2, rtol=2e-2), "bf16 mismatch vs reference"

    print("KERNEL_OK")
</pallas_src>

<mosaic_0001>
module attributes {stable_mosaic.version = 11 : i64} {
  func.func @_adapter_kernel(%arg0: i32, %arg1: i32, %arg2: memref<8x64xf32, #tpu.memory_space<vmem>>, %arg3: memref<64x16xf32, #tpu.memory_space<vmem>>, %arg4: memref<64x16xf32, #tpu.memory_space<vmem>>, %arg5: memref<1x16xf32, #tpu.memory_space<vmem>>, %arg6: memref<1x16xf32, #tpu.memory_space<vmem>>, %arg7: memref<8x16xf32, #tpu.memory_space<vmem>>) attributes {dimension_semantics = [#tpu.dimension_semantics<parallel>, #tpu.dimension_semantics<parallel>], iteration_bounds = array<i64: 1, 1>, scalar_prefetch = 0 : i64, scratch_operands = 0 : i64, tpu.core_type = #tpu.core_type<tc>, window_params = [{transform_indices = @transform_0, window_bounds = array<i64: 8, 64>}, {pipeline_mode = #tpu.pipeline_mode<synchronous>, transform_indices = @transform_1, window_bounds = array<i64: 64, 16>}, {pipeline_mode = #tpu.pipeline_mode<synchronous>, transform_indices = @transform_2, window_bounds = array<i64: 64, 16>}, {pipeline_mode = #tpu.pipeline_mode<synchronous>, transform_indices = @transform_3, window_bounds = array<i64: 1, 16>}, {pipeline_mode = #tpu.pipeline_mode<synchronous>, transform_indices = @transform_4, window_bounds = array<i64: 1, 16>}, {transform_indices = @transform_5, window_bounds = array<i64: 8, 16>}]} {
    %c0 = arith.constant 0 : index
    %c0_0 = arith.constant 0 : index
    %0 = vector.load %arg2[%c0, %c0_0] : memref<8x64xf32, #tpu.memory_space<vmem>>, vector<8x64xf32>
    %c0_1 = arith.constant 0 : index
    %c0_2 = arith.constant 0 : index
    %1 = vector.load %arg4[%c0_1, %c0_2] : memref<64x16xf32, #tpu.memory_space<vmem>>, vector<64x16xf32>
    %cst = arith.constant dense<0.000000e+00> : vector<8x16xf32>
    %2 = tpu.matmul %0, %1, %cst {dimension_numbers = #tpu.dot_dimension_numbers<[1], [0], [0], [1], [0, 0, 1, 1], [], []>} : vector<8x64xf32>, vector<64x16xf32>, vector<8x16xf32> -> vector<8x16xf32>
    %c0_3 = arith.constant 0 : index
    %c0_4 = arith.constant 0 : index
    %3 = vector.load %arg6[%c0_3, %c0_4] : memref<1x16xf32, #tpu.memory_space<vmem>>, vector<1x16xf32>
    %4 = vector.broadcast %3 : vector<1x16xf32> to vector<8x16xf32>
    %5 = arith.addf %2, %4 : vector<8x16xf32>
    %6 = arith.negf %5 : vector<8x16xf32>
    %7 = math.exp %6 : vector<8x16xf32>
    %cst_5 = arith.constant 1.000000e+00 : f32
    %8 = vector.broadcast %cst_5 : f32 to vector<8x16xf32>
    %9 = arith.addf %8, %7 : vector<8x16xf32>
    %10 = arith.divf %8, %9 : vector<8x16xf32>
    %11 = arith.mulf %5, %10 : vector<8x16xf32>
    %c0_6 = arith.constant 0 : index
    %c0_7 = arith.constant 0 : index
    %12 = vector.load %arg3[%c0_6, %c0_7] : memref<64x16xf32, #tpu.memory_space<vmem>>, vector<64x16xf32>
    %cst_8 = arith.constant dense<0.000000e+00> : vector<8x16xf32>
    %13 = tpu.matmul %0, %12, %cst_8 {dimension_numbers = #tpu.dot_dimension_numbers<[1], [0], [0], [1], [0, 0, 1, 1], [], []>} : vector<8x64xf32>, vector<64x16xf32>, vector<8x16xf32> -> vector<8x16xf32>
    %c0_9 = arith.constant 0 : index
    %c0_10 = arith.constant 0 : index
    %14 = vector.load %arg5[%c0_9, %c0_10] : memref<1x16xf32, #tpu.memory_space<vmem>>, vector<1x16xf32>
    %15 = vector.broadcast %14 : vector<1x16xf32> to vector<8x16xf32>
    %16 = arith.addf %13, %15 : vector<8x16xf32>
    %17 = arith.mulf %16, %11 : vector<8x16xf32>
    %c0_11 = arith.constant 0 : index
    %c0_12 = arith.constant 0 : index
    %18 = vector.load %arg7[%c0_11, %c0_12] : memref<8x16xf32, #tpu.memory_space<vmem>>, vector<8x16xf32>
    tpu.vector_store %arg7[%c0_11, %c0_12], %17 {strides = array<i32>} : memref<8x16xf32, #tpu.memory_space<vmem>>, vector<8x16xf32>,
    return
  }
  func.func @transform_0(%arg0: i32, %arg1: i32) -> (i32, i32) {
    %c0_i32 = arith.constant 0 : i32
    %c0_i32_0 = arith.constant 0 : i32
    return %arg1, %c0_i32 : i32, i32
  }
  func.func @transform_1(%arg0: i32, %arg1: i32) -> (i32, i32) {
    %c0_i32 = arith.constant 0 : i32
    %c0_i32_0 = arith.constant 0 : i32
    return %c0_i32, %arg0 : i32, i32
  }
  func.func @transform_2(%arg0: i32, %arg1: i32) -> (i32, i32) {
    %c0_i32 = arith.constant 0 : i32
    %c0_i32_0 = arith.constant 0 : i32
    return %c0_i32, %arg0 : i32, i32
  }
  func.func @transform_3(%arg0: i32, %arg1: i32) -> (i32, i32) {
    %c0_i32 = arith.constant 0 : i32
    %c0_i32_0 = arith.constant 0 : i32
    return %c0_i32, %arg0 : i32, i32
  }
  func.func @transform_4(%arg0: i32, %arg1: i32) -> (i32, i32) {
    %c0_i32 = arith.constant 0 : i32
    %c0_i32_0 = arith.constant 0 : i32
    return %c0_i32, %arg0 : i32, i32
  }
  func.func @transform_5(%arg0: i32, %arg1: i32) -> (i32, i32) {
    %c0_i32 = arith.constant 0 : i32
    return %arg1, %arg0 : i32, i32
  }
}

module attributes {stable_mosaic.version = 11 : i64} {
  func.func @_adapter_kernel(%arg0: i32, %arg1: i32, %arg2: memref<8x64xf32, #tpu.memory_space<vmem>>, %arg3: memref<64x16xf32, #tpu.memory_space<vmem>>, %arg4: memref<64x16xf32, #tpu.memory_space<vmem>>, %arg5: memref<1x16xf32, #tpu.memory_space<vmem>>, %arg6: memref<1x16xf32, #tpu.memory_space<vmem>>, %arg7: memref<8x16xf32, #tpu.memory_space<vmem>>) attributes {dimension_semantics = [#tpu.dimension_semantics<parallel>, #tpu.dimension_semantics<parallel>], iteration_bounds = array<i64: 1, 1>, scalar_prefetch = 0 : i64, scratch_operands = 0 : i64, tpu.core_type = #tpu.core_type<tc>, window_params = [{transform_indices = @transform_0, window_bounds = array<i64: 8, 64>}, {transform_indices = @transform_1, window_bounds = array<i64: 64, 16>}, {transform_indices = @transform_2, window_bounds = array<i64: 64, 16>}, {transform_indices = @transform_3, window_bounds = array<i64: 1, 16>}, {transform_indices = @transform_4, window_bounds = array<i64: 1, 16>}, {transform_indices = @transform_5, window_bounds = array<i64: 8, 16>}]} {
    %c0 = arith.constant 0 : index
    %c0_0 = arith.constant 0 : index
    %0 = vector.load %arg2[%c0, %c0_0] : memref<8x64xf32, #tpu.memory_space<vmem>>, vector<8x64xf32>
    %c0_1 = arith.constant 0 : index
    %c0_2 = arith.constant 0 : index
    %1 = vector.load %arg4[%c0_1, %c0_2] : memref<64x16xf32, #tpu.memory_space<vmem>>, vector<64x16xf32>
    %cst = arith.constant dense<0.000000e+00> : vector<8x16xf32>
    %2 = tpu.matmul %0, %1, %cst {dimension_numbers = #tpu.dot_dimension_numbers<[1], [0], [0], [1], [0, 0, 1, 1], [], []>} : vector<8x64xf32>, vector<64x16xf32>, vector<8x16xf32> -> vector<8x16xf32>
    %c0_3 = arith.constant 0 : index
    %c0_4 = arith.constant 0 : index
    %3 = vector.load %arg6[%c0_3, %c0_4] : memref<1x16xf32, #tpu.memory_space<vmem>>, vector<1x16xf32>
    %4 = vector.broadcast %3 : vector<1x16xf32> to vector<8x16xf32>
    %5 = arith.addf %2, %4 : vector<8x16xf32>
    %6 = arith.negf %5 : vector<8x16xf32>
    %7 = math.exp %6 : vector<8x16xf32>
    %cst_5 = arith.constant 1.000000e+00 : f32
    %8 = vector.broadcast %cst_5 : f32 to vector<8x16xf32>
    %9 = arith.addf %8, %7 : vector<8x16xf32>
    %10 = arith.divf %8, %9 : vector<8x16xf32>
    %11 = arith.mulf %5, %10 : vector<8x16xf32>
    %c0_6 = arith.constant 0 : index
    %c0_7 = arith.constant 0 : index
    %12 = vector.load %arg3[%c0_6, %c0_7] : memref<64x16xf32, #tpu.memory_space<vmem>>, vector<64x16xf32>
    %cst_8 = arith.constant dense<0.000000e+00> : vector<8x16xf32>
    %13 = tpu.matmul %0, %12, %cst_8 {dimension_numbers = #tpu.dot_dimension_numbers<[1], [0], [0], [1], [0, 0, 1, 1], [], []>} : vector<8x64xf32>, vector<64x16xf32>, vector<8x16xf32> -> vector<8x16xf32>
    %c0_9 = arith.constant 0 : index
    %c0_10 = arith.constant 0 : index
    %14 = vector.load %arg5[%c0_9, %c0_10] : memref<1x16xf32, #tpu.memory_space<vmem>>, vector<1x16xf32>
    %15 = vector.broadcast %14 : vector<1x16xf32> to vector<8x16xf32>
    %16 = arith.addf %13, %15 : vector<8x16xf32>
    %17 = arith.mulf %16, %11 : vector<8x16xf32>
    %c0_11 = arith.constant 0 : index
    %c0_12 = arith.constant 0 : index
    %18 = vector.load %arg7[%c0_11, %c0_12] : memref<8x16xf32, #tpu.memory_space<vmem>>, vector<8x16xf32>
    tpu.vector_store %arg7[%c0_11, %c0_12], %17 {strides = array<i32>} : memref<8x16xf32, #tpu.memory_space<vmem>>, vector<8x16xf32>,
    return
  }
  func.func @transform_0(%arg0: i32, %arg1: i32) -> (i32, i32) {
    %c0_i32 = arith.constant 0 : i32
    %c0_i32_0 = arith.constant 0 : i32
    return %arg1, %c0_i32 : i32, i32
  }
  func.func @transform_1(%arg0: i32, %arg1: i32) -> (i32, i32) {
    %c0_i32 = arith.constant 0 : i32
    %c0_i32_0 = arith.constant 0 : i32
    return %c0_i32, %arg0 : i32, i32
  }
  func.func @transform_2(%arg0: i32, %arg1: i32) -> (i32, i32) {
    %c0_i32 = arith.constant 0 : i32
    %c0_i32_0 = arith.constant 0 : i32
    return %c0_i32, %arg0 : i32, i32
  }
  func.func @transform_3(%arg0: i32, %arg1: i32) -> (i32, i32) {
    %c0_i32 = arith.constant 0 : i32
    %c0_i32_0 = arith.constant 0 : i32
    return %c0_i32, %arg0 : i32, i32
  }
  func.func @transform_4(%arg0: i32, %arg1: i32) -> (i32, i32) {
    %c0_i32 = arith.constant 0 : i32
    %c0_i32_0 = arith.constant 0 : i32
    return %c0_i32, %arg0 : i32, i32
  }
  func.func @transform_5(%arg0: i32, %arg1: i32) -> (i32, i32) {
    %c0_i32 = arith.constant 0 : i32
    return %arg1, %arg0 : i32, i32
  }
}

</mosaic_0001>

<llo_original>
// kernel: tpu_custom_call.1
$region0: #{tpu_custom_call.1}
  #allocation0 [shape = 'u32[]', space=smem, size = 0x4, offset = 0x4, fixed_abs, tag = 'smem constant byte address 0x4 - core index']
  #allocation1 [shape = 'u32[144,128]{1,0:T(1,128)}', space=vmem, size = 0x12000, scoped, tag = 'internal scratch']
  %s0 = inlined_call_operand.vmem [shape: f32[8,64], index: 0, kind: input, shape index: {}]
  %s1 = inlined_call_operand.vmem [shape: f32[64,16], index: 1, kind: input, shape index: {}]
  %s2 = inlined_call_operand.vmem [shape: f32[64,16], index: 2, kind: input, shape index: {}]
  %s3 = inlined_call_operand.vmem [shape: f32[1,16], index: 3, kind: input, shape index: {}]
  %s4 = inlined_call_operand.vmem [shape: f32[1,16], index: 4, kind: input, shape index: {}]
  %s5 = inlined_call_operand.hbm [shape: f32[8,16], index: 5, kind: output, shape index: {}]
  %s6 = sld [smem:[#allocation0]]
  $region30: #{tpu_custom_call.1} parent=0
    _
  %s8 = ssub.s32 1, %s6
  %s9 = scalar_select 0, %s8, %s6
  $region1: #{tpu_custom_call.1} parent=0
    #allocation2 [shape = 'u8[4096]{0}', space=vmem, size = 0x1000, scoped, tag = 'output window, operand 0, single buffered']
    #allocation3 [shape = 's32[1]{0}', space=sflag, size = 0x4, scoped, tag = 'scoped memory for tpu_custom_call.1']
    %10 = vsyncpa [#allocation3], 0
    // Predicated region
    $region2: #{tpu_custom_call.1} parent=1 // pred_check
      _
    $region3: #{tpu_custom_call.1} parent=1 // pred_check_branch
      %12 = sbr.rel (0) target = $region5
    $region4: #{tpu_custom_call.1} parent=1 // pred_region
      _
    $region5: #{tpu_custom_call.1} parent=1 // pred_fallthru
      _
    // Predicated region
    $region6: #{tpu_custom_call.1} parent=1 // pred_check
      _
    $region7: #{tpu_custom_call.1} parent=1 // pred_check_branch
      %14 = sbr.rel (0) target = $region9
    $region8: #{tpu_custom_call.1} parent=1 // pred_region
      _
    $region9: #{tpu_custom_call.1} parent=1 // pred_fallthru
      _
    // Predicated region
    $region10: #{tpu_custom_call.1} parent=1 // pred_check
      _
    $region11: #{tpu_custom_call.1} parent=1 // pred_check_branch
      %16 = sbr.rel (0) target = $region13
    $region12: #{tpu_custom_call.1} parent=1 // pred_region
      _
    $region13: #{tpu_custom_call.1} parent=1 // pred_fallthru
      _
    // Predicated region
    $region14: #{tpu_custom_call.1} parent=1 // pred_check
      _
    $region15: #{tpu_custom_call.1} parent=1 // pred_check_branch
      %18 = sbr.rel (0) target = $region17
    $region16: #{tpu_custom_call.1} parent=1 // pred_region
      _
    $region17: #{tpu_custom_call.1} parent=1 // pred_fallthru
      _
    // Predicated region
    $region18: #{tpu_custom_call.1} parent=1 // pred_check
      _
    $region19: #{tpu_custom_call.1} parent=1 // pred_check_branch
      %20 = sbr.rel (0) target = $region21
    $region20: #{tpu_custom_call.1} parent=1 // pred_region
      _
    $region21: #{tpu_custom_call.1} parent=1 // pred_fallthru
      _
    %v21 = vld [vmem:[%s0] sm:$0xff]
    %v22 = vld [vmem:[%s2] sm:$0xff]
    %v23 = vld [vmem:[%s2 + $0x8] sm:$0xff]
    %v24 = vld [vmem:[%s2 + $0x10] sm:$0xff]
    %v25 = vld [vmem:[%s2 + $0x18] sm:$0xff]
    %v26 = vld [vmem:[%s2 + $0x20] sm:$0xff]
    %v27 = vld [vmem:[%s2 + $0x28] sm:$0xff]
    %v28 = vld [vmem:[%s2 + $0x30] sm:$0xff]
    %v29 = vld [vmem:[%s2 + $0x38] sm:$0xff]
    %v30 = vld [vmem:[%s4] sm:$0x1]
    %v32 = vlaneseq
    %v33 = vshrl.u32 %v32, 7
    %v34 = vsub.s32 0, %v33
    %v35 = vrot.slane %v30, %v34
    %vm37 = vcmask 523264
    %v39 = vsel %vm37, %v21, 0
    %41 = vmatprep.subr.mxu0 0.0
    %42 = vmatpush1.msra.mxu0 0.0
    %43 = vmatprep.subr.mxu0 0.0
    %44 = vmatpush1.msra.mxu0 0.0
    %45 = vmatprep.subr.mxu0 0.0
    %46 = vmatpush1.msra.mxu0 0.0
    %47 = vmatprep.subr.mxu0 0.0
    %48 = vmatpush1.msra.mxu0 0.0
    %49 = vmatprep.subr.mxu0 0.0
    %50 = vmatpush1.msra.mxu0 0.0
    %51 = vmatprep.subr.mxu0 0.0
    %52 = vmatpush1.msra.mxu0 0.0
    %53 = vmatprep.subr.mxu0 0.0
    %54 = vmatpush1.msra.mxu0 0.0
    %55 = vmatprep.subr.mxu0 0.0
    %56 = vmatpush1.msra.mxu0 0.0
    %57 = vmatprep.subr.mxu0 0.0
    %58 = vmatpush1.msra.mxu0 %v29
    %59 = vmatprep.subr.mxu0 0.0
    %60 = vmatpush1.msra.mxu0 %v28
    %61 = vmatprep.subr.mxu0 0.0
    %62 = vmatpush1.msra.mxu0 %v27
    %63 = vmatprep.subr.mxu0 0.0
    %64 = vmatpush1.msra.mxu0 %v26
    %65 = vmatprep.subr.mxu0 0.0
    %66 = vmatpush1.msra.mxu0 %v25
    %67 = vmatprep.subr.mxu0 0.0
    %68 = vmatpush1.msra.mxu0 %v24
    %69 = vmatprep.subr.mxu0 0.0
    %70 = vmatpush1.msra.mxu0 %v23
    %71 = vmatprep.subr.mxu0 0.0
    %72 = vmatpush1.msra.mxu0 %v22
    %73 = vmatprep.subr.mxu0 0.0
    %74 = vmatpush2.msra.mxu0 0.0
    %75 = vmatprep.subr.mxu0 0.0
    %76 = vmatpush2.msra.mxu0 0.0
    %77 = vmatprep.subr.mxu0 0.0
    %78 = vmatpush2.msra.mxu0 0.0
    %79 = vmatprep.subr.mxu0 0.0
    %80 = vmatpush2.msra.mxu0 0.0
    %81 = vmatprep.subr.mxu0 0.0
    %82 = vmatpush2.msra.mxu0 0.0
    %83 = vmatprep.subr.mxu0 0.0
    %84 = vmatpush2.msra.mxu0 0.0
    %85 = vmatprep.subr.mxu0 0.0
    %86 = vmatpush2.msra.mxu0 0.0
    %87 = vmatprep.subr.mxu0 0.0
    %88 = vmatpush2.msra.mxu0 0.0
    %89 = vmatprep.subr.mxu0 0.0
    %90 = vmatpush2.msra.mxu0 0.0
    %91 = vmatprep.subr.mxu0 0.0
    %92 = vmatpush2.msra.mxu0 0.0
    %93 = vmatprep.subr.mxu0 0.0
    %94 = vmatpush2.msra.mxu0 0.0
    %95 = vmatprep.subr.mxu0 0.0
    %96 = vmatpush2.msra.mxu0 0.0
    %97 = vmatprep.subr.mxu0 0.0
    %98 = vmatpush2.msra.mxu0 0.0
    %99 = vmatprep.subr.mxu0 0.0
    %100 = vmatpush2.msra.mxu0 0.0
    %101 = vmatprep.subr.mxu0 0.0
    %102 = vmatpush2.msra.mxu0 0.0
    %103 = vmatprep.subr.mxu0 0.0
    %104 = vmatpush2.msra.mxu0 0.0
    %105 = vmatprep.mubr.f32.mxu0 0.0
    %106 = vmatmul.mubr.f32.gmra.mxu0 %v39
    %v107 = vpop.f32.mrf.mxu0
    %v108 = vadd.f32 %v35, %v107
    %v109 = vpop.f32.mrf.mxu0
    %110 = vdwg.mxu0
    %v111 = vxor.u32 %v108, 2147483648
    %v112 = vmul.f32 %v111, 1.442695
    %v113 = vpow.pop %v112
    %v114 = vadd.f32 %v113, 1.0
    %v115 = vrcp.pop %v114
    %v116 = vmul.f32 1.0, %v115
    %v117 = vmul.f32 %v108, %v116
    %v118 = vld [vmem:[%s1] sm:$0xff]
    %v119 = vld [vmem:[%s1 + $0x8] sm:$0xff]
    %v120 = vld [vmem:[%s1 + $0x10] sm:$0xff]
    %v121 = vld [vmem:[%s1 + $0x18] sm:$0xff]
    %v122 = vld [vmem:[%s1 + $0x20] sm:$0xff]
    %v123 = vld [vmem:[%s1 + $0x28] sm:$0xff]
    %v124 = vld [vmem:[%s1 + $0x30] sm:$0xff]
    %v125 = vld [vmem:[%s1 + $0x38] sm:$0xff]
    %v126 = vld [vmem:[%s3] sm:$0x1]
    %v128 = vlaneseq
    %v129 = vshrl.u32 %v128, 7
    %v130 = vsub.s32 0, %v129
    %v131 = vrot.slane %v126, %v130
    %133 = vmatprep.subr.mxu0 0.0
    %134 = vmatpush1.msra.mxu0 0.0
    %135 = vmatprep.subr.mxu0 0.0
    %136 = vmatpush1.msra.mxu0 0.0
    %137 = vmatprep.subr.mxu0 0.0
    %138 = vmatpush1.msra.mxu0 0.0
    %139 = vmatprep.subr.mxu0 0.0
    %140 = vmatpush1.msra.mxu0 0.0
    %141 = vmatprep.subr.mxu0 0.0
    %142 = vmatpush1.msra.mxu0 0.0
    %143 = vmatprep.subr.mxu0 0.0
    %144 = vmatpush1.msra.mxu0 0.0
    %145 = vmatprep.subr.mxu0 0.0
    %146 = vmatpush1.msra.mxu0 0.0
    %147 = vmatprep.subr.mxu0 0.0
    %148 = vmatpush1.msra.mxu0 0.0
    %149 = vmatprep.subr.mxu0 0.0
    %150 = vmatpush1.msra.mxu0 %v125
    %151 = vmatprep.subr.mxu0 0.0
    %152 = vmatpush1.msra.mxu0 %v124
    %153 = vmatprep.subr.mxu0 0.0
    %154 = vmatpush1.msra.mxu0 %v123
    %155 = vmatprep.subr.mxu0 0.0
    %156 = vmatpush1.msra.mxu0 %v122
    %157 = vmatprep.subr.mxu0 0.0
    %158 = vmatpush1.msra.mxu0 %v121
    %159 = vmatprep.subr.mxu0 0.0
    %160 = vmatpush1.msra.mxu0 %v120
    %161 = vmatprep.subr.mxu0 0.0
    %162 = vmatpush1.msra.mxu0 %v119
    %163 = vmatprep.subr.mxu0 0.0
    %164 = vmatpush1.msra.mxu0 %v118
    %165 = vmatprep.subr.mxu0 0.0
    %166 = vmatpush2.msra.mxu0 0.0
    %167 = vmatprep.subr.mxu0 0.0
    %168 = vmatpush2.msra.mxu0 0.0
    %169 = vmatprep.subr.mxu0 0.0
    %170 = vmatpush2.msra.mxu0 0.0
    %171 = vmatprep.subr.mxu0 0.0
    %172 = vmatpush2.msra.mxu0 0.0
    %173 = vmatprep.subr.mxu0 0.0
    %174 = vmatpush2.msra.mxu0 0.0
    %175 = vmatprep.subr.mxu0 0.0
    %176 = vmatpush2.msra.mxu0 0.0
    %177 = vmatprep.subr.mxu0 0.0
    %178 = vmatpush2.msra.mxu0 0.0
    %179 = vmatprep.subr.mxu0 0.0
    %180 = vmatpush2.msra.mxu0 0.0
    %181 = vmatprep.subr.mxu0 0.0
    %182 = vmatpush2.msra.mxu0 0.0
    %183 = vmatprep.subr.mxu0 0.0
    %184 = vmatpush2.msra.mxu0 0.0
    %185 = vmatprep.subr.mxu0 0.0
    %186 = vmatpush2.msra.mxu0 0.0
    %187 = vmatprep.subr.mxu0 0.0
    %188 = vmatpush2.msra.mxu0 0.0
    %189 = vmatprep.subr.mxu0 0.0
    %190 = vmatpush2.msra.mxu0 0.0
    %191 = vmatprep.subr.mxu0 0.0
    %192 = vmatpush2.msra.mxu0 0.0
    %193 = vmatprep.subr.mxu0 0.0
    %194 = vmatpush2.msra.mxu0 0.0
    %195 = vmatprep.subr.mxu0 0.0
    %196 = vmatpush2.msra.mxu0 0.0
    %197 = vmatprep.mubr.f32.mxu0 0.0
    %198 = vmatmul.mubr.f32.gmra.mxu0 %v39
    %v199 = vpop.f32.mrf.mxu0
    %v200 = vadd.f32 %v131, %v199
    %v201 = vpop.f32.mrf.mxu0
    %202 = vdwg.mxu0
    %v203 = vmul.f32 %v200, %v117
    %vm204 = vcmask 130048
    %205 = vst.msk [vmem:[#allocation2] sm:$0xff] %vm204, %v203
    // Predicated region
    $region22: #{tpu_custom_call.1} parent=1 // pred_check
      _
    $region23: #{tpu_custom_call.1} parent=1 // pred_check_branch
      %207 = sbr.rel (0) target = $region25
    $region24: #{tpu_custom_call.1} parent=1 // pred_region
      %s209 = ssub.s32 128, 128
      %210 = vsyncadd [#allocation3], %s209
      %s212 = sshll.u32 [#allocation2], 4
      %s213 = int_to_ptr.vmem [resolvable:$true] %s212
      %215 = dma.vmem_to_hbm [thread:$0]  %s213, 128, %s5, [#allocation3]
    $region25: #{tpu_custom_call.1} parent=1 // pred_fallthru
      _
    // Predicated region
    $region26: #{tpu_custom_call.1} parent=1 // pred_check
      _
    $region27: #{tpu_custom_call.1} parent=1 // pred_check_branch
      %217 = sbr.rel (0) target = $region29
    $region28: #{tpu_custom_call.1} parent=1 // pred_region
      %218 = dma.done [#allocation3], 128
    $region29: #{tpu_custom_call.1} parent=1 // pred_fallthru
      _
    %219 = vsyncpa [#allocation3], 1

// kernel: tpu_custom_call.1
$region0: #{tpu_custom_call.1}
  #allocation0 [shape = 'u32[]', space=smem, size = 0x4, offset = 0x4, fixed_abs, tag = 'smem constant byte address 0x4 - core index']
  #allocation1 [shape = 'u32[144,128]{1,0:T(1,128)}', space=vmem, size = 0x12000, scoped, tag = 'internal scratch']
  %s0 = inlined_call_operand.vmem [shape: f32[8,64], index: 0, kind: input, shape index: {}]
  %s1 = inlined_call_operand.vmem [shape: f32[64,16], index: 1, kind: input, shape index: {}]
  %s2 = inlined_call_operand.vmem [shape: f32[64,16], index: 2, kind: input, shape index: {}]
  %s3 = inlined_call_operand.vmem [shape: f32[1,16], index: 3, kind: input, shape index: {}]
  %s4 = inlined_call_operand.vmem [shape: f32[1,16], index: 4, kind: input, shape index: {}]
  %s5 = inlined_call_operand.hbm [shape: f32[8,16], index: 5, kind: output, shape index: {}]
  %s6 = sld [smem:[#allocation0]]
  $region30: #{tpu_custom_call.1} parent=0
    _
  %s8 = ssub.s32 1, %s6
  %s9 = scalar_select 0, %s8, %s6
  $region1: #{tpu_custom_call.1} parent=0
    #allocation2 [shape = 'u8[4096]{0}', space=vmem, size = 0x1000, scoped, tag = 'output window, operand 0, single buffered']
    #allocation3 [shape = 's32[1]{0}', space=sflag, size = 0x4, scoped, tag = 'scoped memory for tpu_custom_call.1']
    %10 = vsyncpa [#allocation3], 0
    // Predicated region
    $region2: #{tpu_custom_call.1} parent=1 // pred_check
      _
    $region3: #{tpu_custom_call.1} parent=1 // pred_check_branch
      %12 = sbr.rel (0) target = $region5
    $region4: #{tpu_custom_call.1} parent=1 // pred_region
      _
    $region5: #{tpu_custom_call.1} parent=1 // pred_fallthru
      _
    // Predicated region
    $region6: #{tpu_custom_call.1} parent=1 // pred_check
      _
    $region7: #{tpu_custom_call.1} parent=1 // pred_check_branch
      %14 = sbr.rel (0) target = $region9
    $region8: #{tpu_custom_call.1} parent=1 // pred_region
      _
    $region9: #{tpu_custom_call.1} parent=1 // pred_fallthru
      _
    // Predicated region
    $region10: #{tpu_custom_call.1} parent=1 // pred_check
      _
    $region11: #{tpu_custom_call.1} parent=1 // pred_check_branch
      %16 = sbr.rel (0) target = $region13
    $region12: #{tpu_custom_call.1} parent=1 // pred_region
      _
    $region13: #{tpu_custom_call.1} parent=1 // pred_fallthru
      _
    // Predicated region
    $region14: #{tpu_custom_call.1} parent=1 // pred_check
      _
    $region15: #{tpu_custom_call.1} parent=1 // pred_check_branch
      %18 = sbr.rel (0) target = $region17
    $region16: #{tpu_custom_call.1} parent=1 // pred_region
      _
    $region17: #{tpu_custom_call.1} parent=1 // pred_fallthru
      _
    // Predicated region
    $region18: #{tpu_custom_call.1} parent=1 // pred_check
      _
    $region19: #{tpu_custom_call.1} parent=1 // pred_check_branch
      %20 = sbr.rel (0) target = $region21
    $region20: #{tpu_custom_call.1} parent=1 // pred_region
      _
    $region21: #{tpu_custom_call.1} parent=1 // pred_fallthru
      _
    %v21 = vld [vmem:[%s0] sm:$0xff]
    %v22 = vld [vmem:[%s2] sm:$0xff]
    %v23 = vld [vmem:[%s2 + $0x8] sm:$0xff]
    %v24 = vld [vmem:[%s2 + $0x10] sm:$0xff]
    %v25 = vld [vmem:[%s2 + $0x18] sm:$0xff]
    %v26 = vld [vmem:[%s2 + $0x20] sm:$0xff]
    %v27 = vld [vmem:[%s2 + $0x28] sm:$0xff]
    %v28 = vld [vmem:[%s2 + $0x30] sm:$0xff]
    %v29 = vld [vmem:[%s2 + $0x38] sm:$0xff]
    %v30 = vld [vmem:[%s4] sm:$0x1]
    %v32 = vlaneseq
    %v33 = vshrl.u32 %v32, 7
    %v34 = vsub.s32 0, %v33
    %v35 = vrot.slane %v30, %v34
    %vm37 = vcmask 523264
    %v39 = vsel %vm37, %v21, 0
    %41 = vmatprep.subr.mxu0 0.0
    %42 = vmatpush1.msra.mxu0 0.0
    %43 = vmatprep.subr.mxu0 0.0
    %44 = vmatpush1.msra.mxu0 0.0
    %45 = vmatprep.subr.mxu0 0.0
    %46 = vmatpush1.msra.mxu0 0.0
    %47 = vmatprep.subr.mxu0 0.0
    %48 = vmatpush1.msra.mxu0 0.0
    %49 = vmatprep.subr.mxu0 0.0
    %50 = vmatpush1.msra.mxu0 0.0
    %51 = vmatprep.subr.mxu0 0.0
    %52 = vmatpush1.msra.mxu0 0.0
    %53 = vmatprep.subr.mxu0 0.0
    %54 = vmatpush1.msra.mxu0 0.0
    %55 = vmatprep.subr.mxu0 0.0
    %56 = vmatpush1.msra.mxu0 0.0
    %57 = vmatprep.subr.mxu0 0.0
    %58 = vmatpush1.msra.mxu0 %v29
    %59 = vmatprep.subr.mxu0 0.0
    %60 = vmatpush1.msra.mxu0 %v28
    %61 = vmatprep.subr.mxu0 0.0
    %62 = vmatpush1.msra.mxu0 %v27
    %63 = vmatprep.subr.mxu0 0.0
    %64 = vmatpush1.msra.mxu0 %v26
    %65 = vmatprep.subr.mxu0 0.0
    %66 = vmatpush1.msra.mxu0 %v25
    %67 = vmatprep.subr.mxu0 0.0
    %68 = vmatpush1.msra.mxu0 %v24
    %69 = vmatprep.subr.mxu0 0.0
    %70 = vmatpush1.msra.mxu0 %v23
    %71 = vmatprep.subr.mxu0 0.0
    %72 = vmatpush1.msra.mxu0 %v22
    %73 = vmatprep.subr.mxu0 0.0
    %74 = vmatpush2.msra.mxu0 0.0
    %75 = vmatprep.subr.mxu0 0.0
    %76 = vmatpush2.msra.mxu0 0.0
    %77 = vmatprep.subr.mxu0 0.0
    %78 = vmatpush2.msra.mxu0 0.0
    %79 = vmatprep.subr.mxu0 0.0
    %80 = vmatpush2.msra.mxu0 0.0
    %81 = vmatprep.subr.mxu0 0.0
    %82 = vmatpush2.msra.mxu0 0.0
    %83 = vmatprep.subr.mxu0 0.0
    %84 = vmatpush2.msra.mxu0 0.0
    %85 = vmatprep.subr.mxu0 0.0
    %86 = vmatpush2.msra.mxu0 0.0
    %87 = vmatprep.subr.mxu0 0.0
    %88 = vmatpush2.msra.mxu0 0.0
    %89 = vmatprep.subr.mxu0 0.0
    %90 = vmatpush2.msra.mxu0 0.0
    %91 = vmatprep.subr.mxu0 0.0
    %92 = vmatpush2.msra.mxu0 0.0
    %93 = vmatprep.subr.mxu0 0.0
    %94 = vmatpush2.msra.mxu0 0.0
    %95 = vmatprep.subr.mxu0 0.0
    %96 = vmatpush2.msra.mxu0 0.0
    %97 = vmatprep.subr.mxu0 0.0
    %98 = vmatpush2.msra.mxu0 0.0
    %99 = vmatprep.subr.mxu0 0.0
    %100 = vmatpush2.msra.mxu0 0.0
    %101 = vmatprep.subr.mxu0 0.0
    %102 = vmatpush2.msra.mxu0 0.0
    %103 = vmatprep.subr.mxu0 0.0
    %104 = vmatpush2.msra.mxu0 0.0
    %105 = vmatprep.mubr.f32.mxu0 0.0
    %106 = vmatmul.mubr.f32.gmra.mxu0 %v39
    %v107 = vpop.f32.mrf.mxu0
    %v108 = vadd.f32 %v35, %v107
    %v109 = vpop.f32.mrf.mxu0
    %110 = vdwg.mxu0
    %v111 = vxor.u32 %v108, 2147483648
    %v112 = vmul.f32 %v111, 1.442695
    %v113 = vpow.pop %v112
    %v114 = vadd.f32 %v113, 1.0
    %v115 = vrcp.pop %v114
    %v116 = vmul.f32 1.0, %v115
    %v117 = vmul.f32 %v108, %v116
    %v118 = vld [vmem:[%s1] sm:$0xff]
    %v119 = vld [vmem:[%s1 + $0x8] sm:$0xff]
    %v120 = vld [vmem:[%s1 + $0x10] sm:$0xff]
    %v121 = vld [vmem:[%s1 + $0x18] sm:$0xff]
    %v122 = vld [vmem:[%s1 + $0x20] sm:$0xff]
    %v123 = vld [vmem:[%s1 + $0x28] sm:$0xff]
    %v124 = vld [vmem:[%s1 + $0x30] sm:$0xff]
    %v125 = vld [vmem:[%s1 + $0x38] sm:$0xff]
    %v126 = vld [vmem:[%s3] sm:$0x1]
    %v128 = vlaneseq
    %v129 = vshrl.u32 %v128, 7
    %v130 = vsub.s32 0, %v129
    %v131 = vrot.slane %v126, %v130
    %133 = vmatprep.subr.mxu0 0.0
    %134 = vmatpush1.msra.mxu0 0.0
    %135 = vmatprep.subr.mxu0 0.0
    %136 = vmatpush1.msra.mxu0 0.0
    %137 = vmatprep.subr.mxu0 0.0
    %138 = vmatpush1.msra.mxu0 0.0
    %139 = vmatprep.subr.mxu0 0.0
    %140 = vmatpush1.msra.mxu0 0.0
    %141 = vmatprep.subr.mxu0 0.0
    %142 = vmatpush1.msra.mxu0 0.0
    %143 = vmatprep.subr.mxu0 0.0
    %144 = vmatpush1.msra.mxu0 0.0
    %145 = vmatprep.subr.mxu0 0.0
    %146 = vmatpush1.msra.mxu0 0.0
    %147 = vmatprep.subr.mxu0 0.0
    %148 = vmatpush1.msra.mxu0 0.0
    %149 = vmatprep.subr.mxu0 0.0
    %150 = vmatpush1.msra.mxu0 %v125
    %151 = vmatprep.subr.mxu0 0.0
    %152 = vmatpush1.msra.mxu0 %v124
    %153 = vmatprep.subr.mxu0 0.0
    %154 = vmatpush1.msra.mxu0 %v123
    %155 = vmatprep.subr.mxu0 0.0
    %156 = vmatpush1.msra.mxu0 %v122
    %157 = vmatprep.subr.mxu0 0.0
    %158 = vmatpush1.msra.mxu0 %v121
    %159 = vmatprep.subr.mxu0 0.0
    %160 = vmatpush1.msra.mxu0 %v120
    %161 = vmatprep.subr.mxu0 0.0
    %162 = vmatpush1.msra.mxu0 %v119
    %163 = vmatprep.subr.mxu0 0.0
    %164 = vmatpush1.msra.mxu0 %v118
    %165 = vmatprep.subr.mxu0 0.0
    %166 = vmatpush2.msra.mxu0 0.0
    %167 = vmatprep.subr.mxu0 0.0
    %168 = vmatpush2.msra.mxu0 0.0
    %169 = vmatprep.subr.mxu0 0.0
    %170 = vmatpush2.msra.mxu0 0.0
    %171 = vmatprep.subr.mxu0 0.0
    %172 = vmatpush2.msra.mxu0 0.0
    %173 = vmatprep.subr.mxu0 0.0
    %174 = vmatpush2.msra.mxu0 0.0
    %175 = vmatprep.subr.mxu0 0.0
    %176 = vmatpush2.msra.mxu0 0.0
    %177 = vmatprep.subr.mxu0 0.0
    %178 = vmatpush2.msra.mxu0 0.0
    %179 = vmatprep.subr.mxu0 0.0
    %180 = vmatpush2.msra.mxu0 0.0
    %181 = vmatprep.subr.mxu0 0.0
    %182 = vmatpush2.msra.mxu0 0.0
    %183 = vmatprep.subr.mxu0 0.0
    %184 = vmatpush2.msra.mxu0 0.0
    %185 = vmatprep.subr.mxu0 0.0
    %186 = vmatpush2.msra.mxu0 0.0
    %187 = vmatprep.subr.mxu0 0.0
    %188 = vmatpush2.msra.mxu0 0.0
    %189 = vmatprep.subr.mxu0 0.0
    %190 = vmatpush2.msra.mxu0 0.0
    %191 = vmatprep.subr.mxu0 0.0
    %192 = vmatpush2.msra.mxu0 0.0
    %193 = vmatprep.subr.mxu0 0.0
    %194 = vmatpush2.msra.mxu0 0.0
    %195 = vmatprep.subr.mxu0 0.0
    %196 = vmatpush2.msra.mxu0 0.0
    %197 = vmatprep.mubr.f32.mxu0 0.0
    %198 = vmatmul.mubr.f32.gmra.mxu0 %v39
    %v199 = vpop.f32.mrf.mxu0
    %v200 = vadd.f32 %v131, %v199
    %v201 = vpop.f32.mrf.mxu0
    %202 = vdwg.mxu0
    %v203 = vmul.f32 %v200, %v117
    %vm204 = vcmask 130048
    %205 = vst.msk [vmem:[#allocation2] sm:$0xff] %vm204, %v203
    // Predicated region
    $region22: #{tpu_custom_call.1} parent=1 // pred_check
      _
    $region23: #{tpu_custom_call.1} parent=1 // pred_check_branch
      %207 = sbr.rel (0) target = $region25
    $region24: #{tpu_custom_call.1} parent=1 // pred_region
      %s209 = ssub.s32 128, 128
      %210 = vsyncadd [#allocation3], %s209
      %s212 = sshll.u32 [#allocation2], 4
      %s213 = int_to_ptr.vmem [resolvable:$true] %s212
      %215 = dma.vmem_to_hbm [thread:$0]  %s213, 128, %s5, [#allocation3]
    $region25: #{tpu_custom_call.1} parent=1 // pred_fallthru
      _
    // Predicated region
    $region26: #{tpu_custom_call.1} parent=1 // pred_check
      _
    $region27: #{tpu_custom_call.1} parent=1 // pred_check_branch
      %217 = sbr.rel (0) target = $region29
    $region28: #{tpu_custom_call.1} parent=1 // pred_region
      %218 = dma.done [#allocation3], 128
    $region29: #{tpu_custom_call.1} parent=1 // pred_fallthru
      _
    %219 = vsyncpa [#allocation3], 1

</llo_original>
